<compile_context>
chip_gen: v7x
topology: tpu7x:2x2x1
jax: 0.10.0
libtpu: 0.0.40
codegen_flags: <defaults>
</compile_context>

<pallas_src>
import functools

import jax
import jax.numpy as jnp
from jax import lax
from jax.experimental import pallas as pl
from jax.experimental.pallas import tpu as pltpu


def _round_up(x, m):
    return ((x + m - 1) // m) * m


def _codebook_kernel(x_ref, zr_ref, e_ref, esq_ref, idx_ref, zq_ref, loss_ref,
                     *, n_rows):
    """One grid step == one tile of TM flattened (batch*spatial) rows.

    x_ref   : (TM, C)      pseudo-channel rows (torch .view(b,1,c,h,w) semantics)
    zr_ref  : (TM, C)      true channel-last rows (z.permute(0,2,3,1))
    e_ref   : (K_pad, C)   codebook, zero-padded along K to a multiple of 128
    esq_ref : (1, K_pad)   ||e_k||^2, with padded columns preset to 1e30
    idx_ref : (1, 1, TM)   int32 argmin indices (lane-dense store)
    zq_ref  : (TM, C)      straight-through quantized output rows
    loss_ref: (1, 1, 128)  per-tile partial sum of (z_q - z)^2
    """
    x = x_ref[...]                          # [TM, C] f32
    zr = zr_ref[...]                        # [TM, C] f32
    e = e_ref[...]                          # [K_pad, C] f32
    tm = x.shape[0]

    # MXU distance: d[p, k] = ||e_k||^2 - 2 * x_p . e_k
    # Padded codebook rows are zero -> their xe column is exactly 0 and their
    # esq entry is 1e30, so they never win the argmin (no in-kernel mask).
    xe = lax.dot_general(x, e, (((1,), (1,)), ((), ())),
                         preferred_element_type=jnp.float32)        # [TM, K_pad]
    d = esq_ref[...] - 2.0 * xe                                     # [TM, K_pad]

    idx = jnp.argmin(d, axis=-1).astype(jnp.int32)                  # [TM]
    idx_ref[0, 0, :] = idx

    # Exact embedding lookup: one-hot matmul on the MXU (selects rows of e).
    k_iota = lax.broadcasted_iota(jnp.int32, d.shape, 1)            # [TM, K_pad]
    onehot = (k_iota == idx[:, None]).astype(jnp.float32)           # [TM, K_pad]
    zq = jnp.dot(onehot, e, preferred_element_type=jnp.float32)     # [TM, C]

    diff = zq - zr                                                  # (z_q - z)

    # Per-tile partial loss; mask out padded rows so they do not contribute.
    row = lax.broadcasted_iota(jnp.int32, diff.shape, 0) + pl.program_id(0) * tm
    valid = (row < n_rows).astype(jnp.float32)
    partial = jnp.sum(diff * diff * valid)
    loss_ref[...] = jnp.broadcast_to(partial, loss_ref.shape)

    # Straight-through estimator: forward value is z + (z_q - z).
    # TODO(synk): detach/stop_gradient only affects autograd; forward value only.
    zq_ref[...] = zr + diff


@functools.partial(jax.jit, static_argnames=("beta",))
def codebook_forward(z, embedding, beta):
    """z: [B, C, H, W] float32; embedding: [K, C] float32.

    Returns (z_q [B,C,H,W], min_encoding_indices [B,H,W] int32, loss scalar).
    (torch returns int64 indices; JAX default x64-disabled -> int32.)
    """
    b, c, h, w = z.shape
    k = embedding.shape[0]
    hw = h * w
    n = b * hw

    z_nhwc = jnp.transpose(z, (0, 2, 3, 1))                  # [b, h, w, c]
    # torch: z.view(b, 1, c, h, w) on the NHWC-contiguous buffer -> raw reshape.
    # Pseudo-channel rows (flattened over batch*spatial, same row order as z_real).
    x_scr = jnp.transpose(z_nhwc.reshape(b, c, hw), (0, 2, 1)).reshape(n, c)
    z_real = z_nhwc.reshape(n, c)                            # true channel-last rows

    # Row tiling: big lane/sublane-friendly tiles over the flattened batch*spatial axis.
    tm = min(512, _round_up(n, 128))
    n_pad = _round_up(n, tm)
    num_tiles = n_pad // tm
    if n_pad != n:
        pad = n_pad - n
        x_scr = jnp.pad(x_scr, ((0, pad), (0, 0)))
        z_real = jnp.pad(z_real, ((0, pad), (0, 0)))

    # Lane-dense codebook: pad K up to a multiple of 128.
    k_pad = _round_up(k, 128)
    e_pad = embedding if k_pad == k else jnp.pad(embedding, ((0, k_pad - k), (0, 0)))

    # Precompute ||e_k||^2 once; padded columns get a huge finite distance so
    # they can never win the argmin (padded e rows are zero -> xe column == 0).
    e_sq = jnp.sum(e_pad * e_pad, axis=-1)
    if k_pad != k:
        e_sq = jnp.where(jnp.arange(k_pad) < k, e_sq, jnp.float32(1e30))
    e_sq = e_sq.reshape(1, k_pad).astype(jnp.float32)

    kernel = functools.partial(_codebook_kernel, n_rows=n)

    idx_t, zq_flat, loss_part = pl.pallas_call(
        kernel,
        out_shape=(
            jax.ShapeDtypeStruct((num_tiles, 1, tm), jnp.int32),
            jax.ShapeDtypeStruct((n_pad, c), jnp.float32),
            jax.ShapeDtypeStruct((num_tiles, 1, 128), jnp.float32),
        ),
        grid=(num_tiles,),
        in_specs=[
            pl.BlockSpec((tm, c), lambda i: (i, 0)),
            pl.BlockSpec((tm, c), lambda i: (i, 0)),
            pl.BlockSpec((k_pad, c), lambda i: (0, 0)),
            pl.BlockSpec((1, k_pad), lambda i: (0, 0)),
        ],
        out_specs=(
            pl.BlockSpec((1, 1, tm), lambda i: (i, 0, 0)),
            pl.BlockSpec((tm, c), lambda i: (i, 0)),
            pl.BlockSpec((1, 1, 128), lambda i: (i, 0, 0)),
        ),
        compiler_params=pltpu.CompilerParams(
            dimension_semantics=("parallel",)),
    )(x_scr, z_real, e_pad, e_sq)

    min_encoding_indices = idx_t.reshape(n_pad)[:n].reshape(b, h, w)
    z_q_nhwc = zq_flat[:n].reshape(b, h, w, c)

    # loss = mean((zq.detach - z)^2) + beta * mean((zq - z.detach)^2)
    # forward value: both terms share the same mse.
    mse = jnp.sum(loss_part[:, 0, 0]) / jnp.float32(n * c)
    loss = mse + beta * mse

    z_q = jnp.transpose(z_q_nhwc, (0, 3, 1, 2))              # back to [b, c, h, w]
    return z_q, min_encoding_indices, loss


def _reference_forward(z, embedding, beta):
    """Pure-JAX transcription of the torch module's forward (for verification)."""
    b, c, h, w = z.shape
    k = embedding.shape[0]
    z_nhwc = jnp.transpose(z, (0, 2, 3, 1))
    z_view = z_nhwc.reshape(b, c, h, w)          # raw-reshape quirk of the torch code
    dist = jnp.sum((embedding.reshape(1, k, c, 1, 1)
                    - z_view[:, None, :, :, :]) ** 2, axis=2)      # [b, k, h, w]
    idx = jnp.argmin(dist, axis=1)               # [b, h, w]
    z_q = embedding[idx]                         # [b, h, w, c]
    mse = jnp.mean((z_q - z_nhwc) ** 2)
    loss = mse + beta * mse
    return jnp.transpose(z_q, (0, 3, 1, 2)), idx, loss


if __name__ == "__main__":
    key = jax.random.PRNGKey(0)
    k_z, k_e = jax.random.split(key)

    # small shapes consistent with the module
    B, C, H, W = 2, 16, 8, 8          # latent_dim = 16
    K = 32                            # num_codebook_vectors = 32
    beta = 0.25

    z = jax.random.normal(k_z, (B, C, H, W), dtype=jnp.float32)
    # nn.Embedding weight init: uniform_(-1/K, 1/K)
    embedding = jax.random.uniform(k_e, (K, C), dtype=jnp.float32,
                                   minval=-1.0 / K, maxval=1.0 / K)

    z_q, indices, loss = codebook_forward(z, embedding, beta=beta)
    jax.block_until_ready((z_q, indices, loss))

    assert z_q.shape == (B, C, H, W) and z_q.dtype == jnp.float32
    assert indices.shape == (B, H, W)
    assert loss.shape == ()

    ref_zq, ref_idx, ref_loss = _reference_forward(z, embedding, beta)
    jax.block_until_ready((ref_zq, ref_idx, ref_loss))
    assert jnp.array_equal(indices, ref_idx.astype(indices.dtype))
    assert jnp.allclose(z_q, ref_zq, rtol=1e-5, atol=1e-5)
    assert jnp.allclose(loss, ref_loss, rtol=1e-5, atol=1e-6)

    print("KERNEL_OK")
</pallas_src>

<mosaic_0001>
module attributes {stable_mosaic.version = 11 : i64} {
  func.func @_codebook_kernel(%arg0: i32, %arg1: memref<128x16xf32, #tpu.memory_space<vmem>>, %arg2: memref<128x16xf32, #tpu.memory_space<vmem>>, %arg3: memref<128x16xf32, #tpu.memory_space<vmem>>, %arg4: memref<1x128xf32, #tpu.memory_space<vmem>>, %arg5: memref<1x1x128xi32, #tpu.memory_space<vmem>>, %arg6: memref<128x16xf32, #tpu.memory_space<vmem>>, %arg7: memref<1x1x128xf32, #tpu.memory_space<vmem>>) attributes {dimension_semantics = [#tpu.dimension_semantics<parallel>], iteration_bounds = array<i64: 1>, scalar_prefetch = 0 : i64, scratch_operands = 0 : i64, tpu.core_type = #tpu.core_type<tc>, window_params = [{transform_indices = @transform_0, window_bounds = array<i64: 128, 16>}, {transform_indices = @transform_1, window_bounds = array<i64: 128, 16>}, {pipeline_mode = #tpu.pipeline_mode<synchronous>, transform_indices = @transform_2, window_bounds = array<i64: 128, 16>}, {pipeline_mode = #tpu.pipeline_mode<synchronous>, transform_indices = @transform_3, window_bounds = array<i64: 1, 128>}, {transform_indices = @transform_4, window_bounds = array<i64: 1, 1, 128>}, {transform_indices = @transform_5, window_bounds = array<i64: 128, 16>}, {transform_indices = @transform_6, window_bounds = array<i64: 1, 1, 128>}]} {
    %c0 = arith.constant 0 : index
    %c0_0 = arith.constant 0 : index
    %0 = vector.load %arg1[%c0, %c0_0] : memref<128x16xf32, #tpu.memory_space<vmem>>, vector<128x16xf32>
    %c0_1 = arith.constant 0 : index
    %c0_2 = arith.constant 0 : index
    %1 = vector.load %arg2[%c0_1, %c0_2] : memref<128x16xf32, #tpu.memory_space<vmem>>, vector<128x16xf32>
    %c0_3 = arith.constant 0 : index
    %c0_4 = arith.constant 0 : index
    %2 = vector.load %arg3[%c0_3, %c0_4] : memref<128x16xf32, #tpu.memory_space<vmem>>, vector<128x16xf32>
    %cst = arith.constant dense<0.000000e+00> : vector<128x128xf32>
    %3 = tpu.matmul %0, %2, %cst {dimension_numbers = #tpu.dot_dimension_numbers<[1], [1], [0], [0], [0, 0, 1, 0], [], []>} : vector<128x16xf32>, vector<128x16xf32>, vector<128x128xf32> -> vector<128x128xf32>
    %c0_5 = arith.constant 0 : index
    %c0_6 = arith.constant 0 : index
    %4 = vector.load %arg4[%c0_5, %c0_6] : memref<1x128xf32, #tpu.memory_space<vmem>>, vector<1x128xf32>
    %cst_7 = arith.constant 2.000000e+00 : f32
    %5 = vector.broadcast %cst_7 : f32 to vector<128x128xf32>
    %6 = arith.mulf %5, %3 : vector<128x128xf32>
    %7 = vector.broadcast %4 : vector<1x128xf32> to vector<128x128xf32>
    %8 = arith.subf %7, %6 : vector<128x128xf32>
    %9 = tpu.reduce_index %8 {axis = 1 : i32, kind = #tpu.reduction_kind<arg_min>} : vector<128x128xf32> -> vector<128xi32>
    %c0_8 = arith.constant 0 : index
    %c0_9 = arith.constant 0 : index
    %c0_10 = arith.constant 0 : index
    %10 = vector.load %arg5[%c0_8, %c0_9, %c0_10] : memref<1x1x128xi32, #tpu.memory_space<vmem>>, vector<1x1x128xi32>
    %11 = vector.shape_cast %10 : vector<1x1x128xi32> to vector<128xi32>
    %12 = vector.shape_cast %9 : vector<128xi32> to vector<1x1x128xi32>
    tpu.vector_store %arg5[%c0_8, %c0_9, %c0_10], %12 {strides = array<i32>} : memref<1x1x128xi32, #tpu.memory_space<vmem>>, vector<1x1x128xi32>,
    %13 = tpu.iota {dimensions = array<i32: 1>} : vector<128x128xi32>
    %14 = vector.shape_cast %9 : vector<128xi32> to vector<128x1xi32>
    %15 = vector.broadcast %14 : vector<128x1xi32> to vector<128x128xi32>
    %16 = arith.cmpi eq, %13, %15 : vector<128x128xi32>
    %17 = arith.extui %16 : vector<128x128xi1> to vector<128x128xi32>
    %18 = arith.sitofp %17 : vector<128x128xi32> to vector<128x128xf32>
    %cst_11 = arith.constant dense<0.000000e+00> : vector<128x16xf32>
    %19 = tpu.matmul %18, %2, %cst_11 {dimension_numbers = #tpu.dot_dimension_numbers<[1], [0], [0], [1], [0, 0, 1, 1], [], []>} : vector<128x128xf32>, vector<128x16xf32>, vector<128x16xf32> -> vector<128x16xf32>
    %20 = arith.subf %19, %1 : vector<128x16xf32>
    %21 = tpu.iota {dimensions = array<i32: 0>} : vector<128x16xi32>
    %c128_i32 = arith.constant 128 : i32
    %22 = arith.muli %arg0, %c128_i32 : i32
    %23 = vector.broadcast %22 : i32 to vector<128x16xi32>
    %24 = arith.addi %21, %23 : vector<128x16xi32>
    %c128_i32_12 = arith.constant 128 : i32
    %25 = vector.broadcast %c128_i32_12 : i32 to vector<128x16xi32>
    %26 = arith.cmpi slt, %24, %25 : vector<128x16xi32>
    %27 = arith.extui %26 : vector<128x16xi1> to vector<128x16xi32>
    %28 = arith.sitofp %27 : vector<128x16xi32> to vector<128x16xf32>
    %29 = arith.mulf %20, %20 : vector<128x16xf32>
    %30 = arith.mulf %29, %28 : vector<128x16xf32>
    %31 = vector.shape_cast %30 : vector<128x16xf32> to vector<1x128x16xf32>
    %cst_13 = arith.constant dense<0.000000e+00> : vector<1xf32>
    %32 = vector.multi_reduction <add>, %31, %cst_13 [1, 2] : vector<1x128x16xf32> to vector<1xf32>
    %33 = vector.shape_cast %32 : vector<1xf32> to vector<1x1x1xf32>
    %34 = vector.extract %33[0, 0, 0] : f32 from vector<1x1x1xf32>
    %35 = vector.broadcast %34 : f32 to vector<1x1x128xf32>
    %c0_14 = arith.constant 0 : index
    %c0_15 = arith.constant 0 : index
    %c0_16 = arith.constant 0 : index
    %36 = vector.load %arg7[%c0_14, %c0_15, %c0_16] : memref<1x1x128xf32, #tpu.memory_space<vmem>>, vector<1x1x128xf32>
    tpu.vector_store %arg7[%c0_14, %c0_15, %c0_16], %35 {strides = array<i32>} : memref<1x1x128xf32, #tpu.memory_space<vmem>>, vector<1x1x128xf32>,
    %37 = arith.addf %1, %20 : vector<128x16xf32>
    %c0_17 = arith.constant 0 : index
    %c0_18 = arith.constant 0 : index
    %38 = vector.load %arg6[%c0_17, %c0_18] : memref<128x16xf32, #tpu.memory_space<vmem>>, vector<128x16xf32>
    tpu.vector_store %arg6[%c0_17, %c0_18], %37 {strides = array<i32>} : memref<128x16xf32, #tpu.memory_space<vmem>>, vector<128x16xf32>,
    return
  }
  func.func @transform_0(%arg0: i32) -> (i32, i32) {
    %c0_i32 = arith.constant 0 : i32
    %c0_i32_0 = arith.constant 0 : i32
    return %arg0, %c0_i32 : i32, i32
  }
  func.func @transform_1(%arg0: i32) -> (i32, i32) {
    %c0_i32 = arith.constant 0 : i32
    %c0_i32_0 = arith.constant 0 : i32
    return %arg0, %c0_i32 : i32, i32
  }
  func.func @transform_2(%arg0: i32) -> (i32, i32) {
    %c0_i32 = arith.constant 0 : i32
    %c0_i32_0 = arith.constant 0 : i32
    %c0_i32_1 = arith.constant 0 : i32
    return %c0_i32, %c0_i32_0 : i32, i32
  }
  func.func @transform_3(%arg0: i32) -> (i32, i32) {
    %c0_i32 = arith.constant 0 : i32
    %c0_i32_0 = arith.constant 0 : i32
    %c0_i32_1 = arith.constant 0 : i32
    return %c0_i32, %c0_i32_0 : i32, i32
  }
  func.func @transform_4(%arg0: i32) -> (i32, i32, i32) {
    %c0_i32 = arith.constant 0 : i32
    %c0_i32_0 = arith.constant 0 : i32
    %c0_i32_1 = arith.constant 0 : i32
    return %arg0, %c0_i32, %c0_i32_0 : i32, i32, i32
  }
  func.func @transform_5(%arg0: i32) -> (i32, i32) {
    %c0_i32 = arith.constant 0 : i32
    %c0_i32_0 = arith.constant 0 : i32
    return %arg0, %c0_i32 : i32, i32
  }
  func.func @transform_6(%arg0: i32) -> (i32, i32, i32) {
    %c0_i32 = arith.constant 0 : i32
    %c0_i32_0 = arith.constant 0 : i32
    %c0_i32_1 = arith.constant 0 : i32
    return %arg0, %c0_i32, %c0_i32_0 : i32, i32, i32
  }
}

</mosaic_0001>

<llo_original>
// kernel: codebook_forward.1
$region0: #{codebook_forward.1}
  #allocation0 [shape = 'u32[]', space=smem, size = 0x4, offset = 0x4, fixed_abs, tag = 'smem constant byte address 0x4 - core index']
  #allocation1 [shape = 'u32[144,128]{1,0:T(1,128)}', space=vmem, size = 0x12000, scoped, tag = 'internal scratch']
  %s0 = inlined_call_operand.vmem [shape: f32[128,16], index: 0, kind: input, shape index: {}]
  %s1 = inlined_call_operand.vmem [shape: f32[128,16], index: 1, kind: input, shape index: {}]
  %s2 = inlined_call_operand.vmem [shape: f32[128,16], index: 2, kind: input, shape index: {}]
  %s3 = inlined_call_operand.vmem [shape: f32[1,128], index: 3, kind: input, shape index: {}]
  %s4 = inlined_call_operand.vmem [shape: s32[1,1,128], index: 4, kind: output, shape index: {0}]
  %s5 = inlined_call_operand.hbm [shape: f32[128,16], index: 5, kind: output, shape index: {1}]
  %s6 = inlined_call_operand.vmem [shape: f32[1,1,128], index: 6, kind: output, shape index: {2}]
  %7 = xla_tuple %s4, %s5, %s6
  %s8 = sld [smem:[#allocation0]]
  $region42: #{codebook_forward.1} parent=0
    _
  %s10 = ssub.s32 1, %s8
  %s11 = scalar_select 0, %s10, %s8
  $region1: #{codebook_forward.1} parent=0
    #allocation2 [shape = 'u8[65536]{0}', space=vmem, size = 0x10000, scoped, tag = 'output window, operand 1, single buffered']
    #allocation3 [shape = 's32[1]{0}', space=sflag, size = 0x4, scoped, tag = 'scoped memory for codebook_forward.1']
    %12 = vsyncpa [#allocation3], 0
    // Predicated region
    $region2: #{codebook_forward.1} parent=1 // pred_check
      _
    $region3: #{codebook_forward.1} parent=1 // pred_check_branch
      %14 = sbr.rel (0) target = $region5
    $region4: #{codebook_forward.1} parent=1 // pred_region
      _
    $region5: #{codebook_forward.1} parent=1 // pred_fallthru
      _
    // Predicated region
    $region6: #{codebook_forward.1} parent=1 // pred_check
      _
    $region7: #{codebook_forward.1} parent=1 // pred_check_branch
      %16 = sbr.rel (0) target = $region9
    $region8: #{codebook_forward.1} parent=1 // pred_region
      _
    $region9: #{codebook_forward.1} parent=1 // pred_fallthru
      _
    // Predicated region
    $region10: #{codebook_forward.1} parent=1 // pred_check
      _
    $region11: #{codebook_forward.1} parent=1 // pred_check_branch
      %18 = sbr.rel (0) target = $region13
    $region12: #{codebook_forward.1} parent=1 // pred_region
      _
    $region13: #{codebook_forward.1} parent=1 // pred_fallthru
      _
    // Predicated region
    $region14: #{codebook_forward.1} parent=1 // pred_check
      _
    $region15: #{codebook_forward.1} parent=1 // pred_check_branch
      %20 = sbr.rel (0) target = $region17
    $region16: #{codebook_forward.1} parent=1 // pred_region
      _
    $region17: #{codebook_forward.1} parent=1 // pred_fallthru
      _
    %v21 = vld [vmem:[%s0] sm:$0xff]
    %v22 = vld [vmem:[%s0 + $0x8] sm:$0xff]
    %v23 = vld [vmem:[%s0 + $0x10] sm:$0xff]
    %v24 = vld [vmem:[%s0 + $0x18] sm:$0xff]
    %v25 = vld [vmem:[%s0 + $0x20] sm:$0xff]
    %v26 = vld [vmem:[%s0 + $0x28] sm:$0xff]
    %v27 = vld [vmem:[%s0 + $0x30] sm:$0xff]
    %v28 = vld [vmem:[%s0 + $0x38] sm:$0xff]
    %v29 = vld [vmem:[%s0 + $0x40] sm:$0xff]
    %v30 = vld [vmem:[%s0 + $0x48] sm:$0xff]
    %v31 = vld [vmem:[%s0 + $0x50] sm:$0xff]
    %v32 = vld [vmem:[%s0 + $0x58] sm:$0xff]
    %v33 = vld [vmem:[%s0 + $0x60] sm:$0xff]
    %v34 = vld [vmem:[%s0 + $0x68] sm:$0xff]
    %v35 = vld [vmem:[%s0 + $0x70] sm:$0xff]
    %v36 = vld [vmem:[%s0 + $0x78] sm:$0xff]
    %v37 = vld [vmem:[%s1] sm:$0xff]
    %v38 = vld [vmem:[%s1 + $0x8] sm:$0xff]
    %v39 = vld [vmem:[%s1 + $0x10] sm:$0xff]
    %v40 = vld [vmem:[%s1 + $0x18] sm:$0xff]
    %v41 = vld [vmem:[%s1 + $0x20] sm:$0xff]
    %v42 = vld [vmem:[%s1 + $0x28] sm:$0xff]
    %v43 = vld [vmem:[%s1 + $0x30] sm:$0xff]
    %v44 = vld [vmem:[%s1 + $0x38] sm:$0xff]
    %v45 = vld [vmem:[%s1 + $0x40] sm:$0xff]
    %v46 = vld [vmem:[%s1 + $0x48] sm:$0xff]
    %v47 = vld [vmem:[%s1 + $0x50] sm:$0xff]
    %v48 = vld [vmem:[%s1 + $0x58] sm:$0xff]
    %v49 = vld [vmem:[%s1 + $0x60] sm:$0xff]
    %v50 = vld [vmem:[%s1 + $0x68] sm:$0xff]
    %v51 = vld [vmem:[%s1 + $0x70] sm:$0xff]
    %v52 = vld [vmem:[%s1 + $0x78] sm:$0xff]
    %v53 = vld [vmem:[%s2] sm:$0xff]
    %v54 = vld [vmem:[%s2 + $0x8] sm:$0xff]
    %v55 = vld [vmem:[%s2 + $0x10] sm:$0xff]
    %v56 = vld [vmem:[%s2 + $0x18] sm:$0xff]
    %v57 = vld [vmem:[%s2 + $0x20] sm:$0xff]
    %v58 = vld [vmem:[%s2 + $0x28] sm:$0xff]
    %v59 = vld [vmem:[%s2 + $0x30] sm:$0xff]
    %v60 = vld [vmem:[%s2 + $0x38] sm:$0xff]
    %v61 = vld [vmem:[%s2 + $0x40] sm:$0xff]
    %v62 = vld [vmem:[%s2 + $0x48] sm:$0xff]
    %v63 = vld [vmem:[%s2 + $0x50] sm:$0xff]
    %v64 = vld [vmem:[%s2 + $0x58] sm:$0xff]
    %v65 = vld [vmem:[%s2 + $0x60] sm:$0xff]
    %v66 = vld [vmem:[%s2 + $0x68] sm:$0xff]
    %v67 = vld [vmem:[%s2 + $0x70] sm:$0xff]
    %v68 = vld [vmem:[%s2 + $0x78] sm:$0xff]
    %vm69 = vcmask 130048
    %v71 = vsel %vm69, %v21, 0
    %v74 = vsel %vm69, %v22, 0
    %v77 = vsel %vm69, %v23, 0
    %v80 = vsel %vm69, %v24, 0
    %v83 = vsel %vm69, %v25, 0
    %v86 = vsel %vm69, %v26, 0
    %v89 = vsel %vm69, %v27, 0
    %v92 = vsel %vm69, %v28, 0
    %v95 = vsel %vm69, %v29, 0
    %v98 = vsel %vm69, %v30, 0
    %v101 = vsel %vm69, %v31, 0
    %v104 = vsel %vm69, %v32, 0
    %v107 = vsel %vm69, %v33, 0
    %v110 = vsel %vm69, %v34, 0
    %v113 = vsel %vm69, %v35, 0
    %v116 = vsel %vm69, %v36, 0
    %v119 = vsel %vm69, %v53, 0
    %v122 = vsel %vm69, %v54, 0
    %v125 = vsel %vm69, %v55, 0
    %v128 = vsel %vm69, %v56, 0
    %v131 = vsel %vm69, %v57, 0
    %v134 = vsel %vm69, %v58, 0
    %v137 = vsel %vm69, %v59, 0
    %v140 = vsel %vm69, %v60, 0
    %v143 = vsel %vm69, %v61, 0
    %v146 = vsel %vm69, %v62, 0
    %v149 = vsel %vm69, %v63, 0
    %v152 = vsel %vm69, %v64, 0
    %v155 = vsel %vm69, %v65, 0
    %v158 = vsel %vm69, %v66, 0
    %v161 = vsel %vm69, %v67, 0
    %v164 = vsel %vm69, %v68, 0
    %166 = vmatprep.subr.mxu0 0.0
    %167 = vmatpush1.xpose.msra.mxu0 %v119
    %168 = vmatprep.subr.mxu0 0.0
    %169 = vmatpush1.xpose.msra.mxu0 %v122
    %170 = vmatprep.subr.mxu0 0.0
    %171 = vmatpush1.xpose.msra.mxu0 %v125
    %172 = vmatprep.subr.mxu0 0.0
    %173 = vmatpush1.xpose.msra.mxu0 %v128
    %174 = vmatprep.subr.mxu0 0.0
    %175 = vmatpush1.xpose.msra.mxu0 %v131
    %176 = vmatprep.subr.mxu0 0.0
    %177 = vmatpush1.xpose.msra.mxu0 %v134
    %178 = vmatprep.subr.mxu0 0.0
    %179 = vmatpush1.xpose.msra.mxu0 %v137
    %180 = vmatprep.subr.mxu0 0.0
    %181 = vmatpush1.xpose.msra.mxu0 %v140
    %182 = vmatprep.subr.mxu0 0.0
    %183 = vmatpush1.xpose.msra.mxu0 %v143
    %184 = vmatprep.subr.mxu0 0.0
    %185 = vmatpush1.xpose.msra.mxu0 %v146
    %186 = vmatprep.subr.mxu0 0.0
    %187 = vmatpush1.xpose.msra.mxu0 %v149
    %188 = vmatprep.subr.mxu0 0.0
    %189 = vmatpush1.xpose.msra.mxu0 %v152
    %190 = vmatprep.subr.mxu0 0.0
    %191 = vmatpush1.xpose.msra.mxu0 %v155
    %192 = vmatprep.subr.mxu0 0.0
    %193 = vmatpush1.xpose.msra.mxu0 %v158
    %194 = vmatprep.subr.mxu0 0.0
    %195 = vmatpush1.xpose.msra.mxu0 %v161
    %196 = vmatprep.subr.mxu0 0.0
    %197 = vmatpush1.xpose.msra.mxu0 %v164
    %198 = vmatprep.subr.mxu0 0.0
    %199 = vmatpush1.xpose.msra.mxu0 0.0
    %200 = vmatprep.subr.mxu0 0.0
    %201 = vmatpush1.xpose.msra.mxu0 0.0
    %202 = vmatprep.subr.mxu0 0.0
    %203 = vmatpush1.xpose.msra.mxu0 0.0
    %204 = vmatprep.subr.mxu0 0.0
    %205 = vmatpush1.xpose.msra.mxu0 0.0
    %206 = vmatprep.subr.mxu0 0.0
    %207 = vmatpush1.xpose.msra.mxu0 0.0
    %208 = vmatprep.subr.mxu0 0.0
    %209 = vmatpush1.xpose.msra.mxu0 0.0
    %210 = vmatprep.subr.mxu0 0.0
    %211 = vmatpush1.xpose.msra.mxu0 0.0
    %212 = vmatprep.subr.mxu0 0.0
    %213 = vmatpush1.xpose.msra.mxu0 0.0
    %214 = vmatprep.subr.mxu0 0.0
    %215 = vmatpush1.xpose.msra.mxu0 0.0
    %216 = vmatprep.subr.mxu0 0.0
    %217 = vmatpush1.xpose.msra.mxu0 0.0
    %218 = vmatprep.subr.mxu0 0.0
    %219 = vmatpush1.xpose.msra.mxu0 0.0
    %220 = vmatprep.subr.mxu0 0.0
    %221 = vmatpush1.xpose.msra.mxu0 0.0
    %222 = vmatprep.subr.mxu0 0.0
    %223 = vmatpush1.xpose.msra.mxu0 0.0
    %224 = vmatprep.subr.mxu0 0.0
    %225 = vmatpush1.xpose.msra.mxu0 0.0
    %226 = vmatprep.subr.mxu0 0.0
    %227 = vmatpush1.xpose.msra.mxu0 0.0
    %228 = vmatprep.subr.mxu0 0.0
    %229 = vmatpush1.xpose.msra.mxu0 0.0
    %230 = vmatprep.mubr.f32.mxu0 0.0
    %231 = vmatmul.mubr.f32.gmra.mrb[0].mxu0 %v71
    %v232 = vpop.f32.mrb[0].mxu0
    %v233 = vadd.f32 0.0, %v232
    %v234 = vpop.f32.mrb[0].mxu0
    %235 = vmatprep.mubr.f32.mxu0 0.0
    %236 = vmatmul.mubr.f32.gmra.mrb[0].mxu0 %v74
    %v237 = vpop.f32.mrb[0].mxu0
    %v238 = vadd.f32 0.0, %v237
    %v239 = vpop.f32.mrb[0].mxu0
    %240 = vmatprep.mubr.f32.mxu0 0.0
    %241 = vmatmul.mubr.f32.gmra.mrb[0].mxu0 %v77
    %v242 = vpop.f32.mrb[0].mxu0
    %v243 = vadd.f32 0.0, %v242
    %v244 = vpop.f32.mrb[0].mxu0
    %245 = vmatprep.mubr.f32.mxu0 0.0
    %246 = vmatmul.mubr.f32.gmra.mrb[0].mxu0 %v80
    %v247 = vpop.f32.mrb[0].mxu0
    %v248 = vadd.f32 0.0, %v247
    %v249 = vpop.f32.mrb[0].mxu0
    %250 = vmatprep.mubr.f32.mxu0 0.0
    %251 = vmatmul.mubr.f32.gmra.mrb[0].mxu0 %v83
    %v252 = vpop.f32.mrb[0].mxu0
    %v253 = vadd.f32 0.0, %v252
    %v254 = vpop.f32.mrb[0].mxu0
    %255 = vmatprep.mubr.f32.mxu0 0.0
    %256 = vmatmul.mubr.f32.gmra.mrb[0].mxu0 %v86
    %v257 = vpop.f32.mrb[0].mxu0
    %v258 = vadd.f32 0.0, %v257
    %v259 = vpop.f32.mrb[0].mxu0
    %260 = vmatprep.mubr.f32.mxu0 0.0
    %261 = vmatmul.mubr.f32.gmra.mrb[0].mxu0 %v89
    %v262 = vpop.f32.mrb[0].mxu0
    %v263 = vadd.f32 0.0, %v262
    %v264 = vpop.f32.mrb[0].mxu0
    %265 = vmatprep.mubr.f32.mxu0 0.0
    %266 = vmatmul.mubr.f32.gmra.mrb[0].mxu0 %v92
    %v267 = vpop.f32.mrb[0].mxu0
    %v268 = vadd.f32 0.0, %v267
    %v269 = vpop.f32.mrb[0].mxu0
    %270 = vmatprep.mubr.f32.mxu0 0.0
    %271 = vmatmul.mubr.f32.gmra.mrb[0].mxu0 %v95
    %v272 = vpop.f32.mrb[0].mxu0
    %v273 = vadd.f32 0.0, %v272
    %v274 = vpop.f32.mrb[0].mxu0
    %275 = vmatprep.mubr.f32.mxu0 0.0
    %276 = vmatmul.mubr.f32.gmra.mrb[0].mxu0 %v98
    %v277 = vpop.f32.mrb[0].mxu0
    %v278 = vadd.f32 0.0, %v277
    %v279 = vpop.f32.mrb[0].mxu0
    %280 = vmatprep.mubr.f32.mxu0 0.0
    %281 = vmatmul.mubr.f32.gmra.mrb[0].mxu0 %v101
    %v282 = vpop.f32.mrb[0].mxu0
    %v283 = vadd.f32 0.0, %v282
    %v284 = vpop.f32.mrb[0].mxu0
    %285 = vmatprep.mubr.f32.mxu0 0.0
    %286 = vmatmul.mubr.f32.gmra.mrb[0].mxu0 %v104
    %v287 = vpop.f32.mrb[0].mxu0
    %v288 = vadd.f32 0.0, %v287
    %v289 = vpop.f32.mrb[0].mxu0
    %290 = vmatprep.mubr.f32.mxu0 0.0
    %291 = vmatmul.mubr.f32.gmra.mrb[0].mxu0 %v107
    %v292 = vpop.f32.mrb[0].mxu0
    %v293 = vadd.f32 0.0, %v292
    %v294 = vpop.f32.mrb[0].mxu0
    %295 = vmatprep.mubr.f32.mxu0 0.0
    %296 = vmatmul.mubr.f32.gmra.mrb[0].mxu0 %v110
    %v297 = vpop.f32.mrb[0].mxu0
    %v298 = vadd.f32 0.0, %v297
    %v299 = vpop.f32.mrb[0].mxu0
    %300 = vmatprep.mubr.f32.mxu0 0.0
    %301 = vmatmul.mubr.f32.gmra.mrb[0].mxu0 %v113
    %v302 = vpop.f32.mrb[0].mxu0
    %v303 = vadd.f32 0.0, %v302
    %v304 = vpop.f32.mrb[0].mxu0
    %305 = vmatprep.mubr.f32.mxu0 0.0
    %306 = vmatmul.mubr.f32.gmra.mrb[0].mxu0 %v116
    %v307 = vpop.f32.mrb[0].mxu0
    %v308 = vadd.f32 0.0, %v307
    %v309 = vpop.f32.mrb[0].mxu0
    %310 = vdwg.mxu0
    %v311 = vld [vmem:[%s3] sm:$0x1]
    %v312 = vmul.f32 %v233, 2.0
    %v313 = vmul.f32 %v238, 2.0
    %v314 = vmul.f32 %v243, 2.0
    %v315 = vmul.f32 %v248, 2.0
    %v316 = vmul.f32 %v253, 2.0
    %v317 = vmul.f32 %v258, 2.0
    %v318 = vmul.f32 %v263, 2.0
    %v319 = vmul.f32 %v268, 2.0
    %v320 = vmul.f32 %v273, 2.0
    %v321 = vmul.f32 %v278, 2.0
    %v322 = vmul.f32 %v283, 2.0
    %v323 = vmul.f32 %v288, 2.0
    %v324 = vmul.f32 %v293, 2.0
    %v325 = vmul.f32 %v298, 2.0
    %v326 = vmul.f32 %v303, 2.0
    %v327 = vmul.f32 %v308, 2.0
    %v329 = vlaneseq
    %v330 = vshrl.u32 %v329, 7
    %v331 = vsub.s32 0, %v330
    %v332 = vrot.slane %v311, %v331
    %v334 = vsub.f32 %v332, %v312
    %v335 = vsub.f32 %v332, %v313
    %v336 = vsub.f32 %v332, %v314
    %v337 = vsub.f32 %v332, %v315
    %v338 = vsub.f32 %v332, %v316
    %v339 = vsub.f32 %v332, %v317
    %v340 = vsub.f32 %v332, %v318
    %v341 = vsub.f32 %v332, %v319
    %v342 = vsub.f32 %v332, %v320
    %v343 = vsub.f32 %v332, %v321
    %v344 = vsub.f32 %v332, %v322
    %v345 = vsub.f32 %v332, %v323
    %v346 = vsub.f32 %v332, %v324
    %v347 = vsub.f32 %v332, %v325
    %v348 = vsub.f32 %v332, %v326
    %v349 = vsub.f32 %v332, %v327
    %350 = vmin.index.xlane.f32.xlu0 %v334
    %v351 = vpop.xlane.xlu0 %350
    %352 = vmin.index.xlane.f32.xlu0 %v335
    %v353 = vpop.xlane.xlu0 %352
    %354 = vmin.index.xlane.f32.xlu0 %v336
    %v355 = vpop.xlane.xlu0 %354
    %356 = vmin.index.xlane.f32.xlu0 %v337
    %v357 = vpop.xlane.xlu0 %356
    %358 = vmin.index.xlane.f32.xlu0 %v338
    %v359 = vpop.xlane.xlu0 %358
    %360 = vmin.index.xlane.f32.xlu0 %v339
    %v361 = vpop.xlane.xlu0 %360
    %362 = vmin.index.xlane.f32.xlu0 %v340
    %v363 = vpop.xlane.xlu0 %362
    %364 = vmin.index.xlane.f32.xlu0 %v341
    %v365 = vpop.xlane.xlu0 %364
    %366 = vmin.index.xlane.f32.xlu0 %v342
    %v367 = vpop.xlane.xlu0 %366
    %368 = vmin.index.xlane.f32.xlu0 %v343
    %v369 = vpop.xlane.xlu0 %368
    %370 = vmin.index.xlane.f32.xlu0 %v344
    %v371 = vpop.xlane.xlu0 %370
    %372 = vmin.index.xlane.f32.xlu0 %v345
    %v373 = vpop.xlane.xlu0 %372
    %374 = vmin.index.xlane.f32.xlu0 %v346
    %v375 = vpop.xlane.xlu0 %374
    %376 = vmin.index.xlane.f32.xlu0 %v347
    %v377 = vpop.xlane.xlu0 %376
    %378 = vmin.index.xlane.f32.xlu0 %v348
    %v379 = vpop.xlane.xlu0 %378
    %380 = vmin.index.xlane.f32.xlu0 %v349
    %v381 = vpop.xlane.xlu0 %380
    %v382 = vlaneseq
    %v383 = vand.u32 %v382, 127
    %v384 = vlaneseq
    %v385 = vshrl.u32 %v384, 7
    %v386 = vsub.s32 %v383, %v385
    %v387 = vrot.slane %v351, %v386
    %v388 = vadd.s32 %v383, 4294967288
    %v389 = vlaneseq
    %v390 = vshrl.u32 %v389, 7
    %v391 = vsub.s32 %v388, %v390
    %v392 = vrot.slane %v353, %v391
    %vm393 = vcmask 130112
    %v394 = vsel %vm393, %v392, %v387
    %v395 = vadd.s32 %v383, 4294967280
    %v396 = vlaneseq
    %v397 = vshrl.u32 %v396, 7
    %v398 = vsub.s32 %v395, %v397
    %v399 = vrot.slane %v355, %v398
    %vm400 = vcmask 195712
    %v401 = vsel %vm400, %v399, %v394
    %v402 = vadd.s32 %v383, 4294967272
    %v403 = vlaneseq
    %v404 = vshrl.u32 %v403, 7
    %v405 = vsub.s32 %v402, %v404
    %v406 = vrot.slane %v357, %v405
    %vm407 = vcmask 261312
    %v408 = vsel %vm407, %v406, %v401
    %v409 = vadd.s32 %v383, 4294967264
    %v410 = vlaneseq
    %v411 = vshrl.u32 %v410, 7
    %v412 = vsub.s32 %v409, %v411
    %v413 = vrot.slane %v359, %v412
    %vm414 = vcmask 326912
    %v415 = vsel %vm414, %v413, %v408
    %v416 = vadd.s32 %v383, 4294967256
    %v417 = vlaneseq
    %v418 = vshrl.u32 %v417, 7
    %v419 = vsub.s32 %v416, %v418
    %v420 = vrot.slane %v361, %v419
    %vm421 = vcmask 392512
    %v422 = vsel %vm421, %v420, %v415
    %v423 = vadd.s32 %v383, 4294967248
    %v424 = vlaneseq
    %v425 = vshrl.u32 %v424, 7
    %v426 = vsub.s32 %v423, %v425
    %v427 = vrot.slane %v363, %v426
    %vm428 = vcmask 458112
    %v429 = vsel %vm428, %v427, %v422
    %v430 = vadd.s32 %v383, 4294967240
    %v431 = vlaneseq
    %v432 = vshrl.u32 %v431, 7
    %v433 = vsub.s32 %v430, %v432
    %v434 = vrot.slane %v365, %v433
    %vm435 = vcmask 523712
    %v436 = vsel %vm435, %v434, %v429
    %v437 = vadd.s32 %v383, 4294967232
    %v438 = vlaneseq
    %v439 = vshrl.u32 %v438, 7
    %v440 = vsub.s32 %v437, %v439
    %v441 = vrot.slane %v367, %v440
    %vm442 = vcmask 589312
    %v443 = vsel %vm442, %v441, %v436
    %v444 = vadd.s32 %v383, 4294967224
    %v445 = vlaneseq
    %v446 = vshrl.u32 %v445, 7
    %v447 = vsub.s32 %v444, %v446
    %v448 = vrot.slane %v369, %v447
    %vm449 = vcmask 654912
    %v450 = vsel %vm449, %v448, %v443
    %v451 = vadd.s32 %v383, 4294967216
    %v452 = vlaneseq
    %v453 = vshrl.u32 %v452, 7
    %v454 = vsub.s32 %v451, %v453
    %v455 = vrot.slane %v371, %v454
    %vm456 = vcmask 720512
    %v457 = vsel %vm456, %v455, %v450
    %v458 = vadd.s32 %v383, 4294967208
    %v459 = vlaneseq
    %v460 = vshrl.u32 %v459, 7
    %v461 = vsub.s32 %v458, %v460
    %v462 = vrot.slane %v373, %v461
    %vm463 = vcmask 786112
    %v464 = vsel %vm463, %v462, %v457
    %v465 = vadd.s32 %v383, 4294967200
    %v466 = vlaneseq
    %v467 = vshrl.u32 %v466, 7
    %v468 = vsub.s32 %v465, %v467
    %v469 = vrot.slane %v375, %v468
    %vm470 = vcmask 851712
    %v471 = vsel %vm470, %v469, %v464
    %v472 = vadd.s32 %v383, 4294967192
    %v473 = vlaneseq
    %v474 = vshrl.u32 %v473, 7
    %v475 = vsub.s32 %v472, %v474
    %v476 = vrot.slane %v377, %v475
    %vm477 = vcmask 917312
    %v478 = vsel %vm477, %v476, %v471
    %v479 = vadd.s32 %v383, 4294967184
    %v480 = vlaneseq
    %v481 = vshrl.u32 %v480, 7
    %v482 = vsub.s32 %v479, %v481
    %v483 = vrot.slane %v379, %v482
    %vm484 = vcmask 982912
    %v485 = vsel %vm484, %v483, %v478
    %v486 = vadd.s32 %v383, 4294967176
    %v487 = vlaneseq
    %v488 = vshrl.u32 %v487, 7
    %v489 = vsub.s32 %v486, %v488
    %v490 = vrot.slane %v381, %v489
    %vm491 = vcmask 1048512
    %v492 = vsel %vm491, %v490, %v485
    %493 = vst [vmem:[%s4] sm:$0x1] %v492
    %vm494 = vcmp.eq.s32.totalorder %v383, %v351
    %vm495 = vcmp.eq.s32.totalorder %v383, %v353
    %vm496 = vcmp.eq.s32.totalorder %v383, %v355
    %vm497 = vcmp.eq.s32.totalorder %v383, %v357
    %vm498 = vcmp.eq.s32.totalorder %v383, %v359
    %vm499 = vcmp.eq.s32.totalorder %v383, %v361
    %vm500 = vcmp.eq.s32.totalorder %v383, %v363
    %vm501 = vcmp.eq.s32.totalorder %v383, %v365
    %vm502 = vcmp.eq.s32.totalorder %v383, %v367
    %vm503 = vcmp.eq.s32.totalorder %v383, %v369
    %vm504 = vcmp.eq.s32.totalorder %v383, %v371
    %vm505 = vcmp.eq.s32.totalorder %v383, %v373
    %vm506 = vcmp.eq.s32.totalorder %v383, %v375
    %vm507 = vcmp.eq.s32.totalorder %v383, %v377
    %vm508 = vcmp.eq.s32.totalorder %v383, %v379
    %vm509 = vcmp.eq.s32.totalorder %v383, %v381
    %v510 = vsel %vm494, 1, 0
    %v511 = vsel %vm495, 1, 0
    %v512 = vsel %vm496, 1, 0
    %v513 = vsel %vm497, 1, 0
    %v514 = vsel %vm498, 1, 0
    %v515 = vsel %vm499, 1, 0
    %v516 = vsel %vm500, 1, 0
    %v517 = vsel %vm501, 1, 0
    %v518 = vsel %vm502, 1, 0
    %v519 = vsel %vm503, 1, 0
    %v520 = vsel %vm504, 1, 0
    %v521 = vsel %vm505, 1, 0
    %v522 = vsel %vm506, 1, 0
    %v523 = vsel %vm507, 1, 0
    %v524 = vsel %vm508, 1, 0
    %v525 = vsel %vm509, 1, 0
    %v526 = vcvt.s32.f32 %v510
    %v527 = vcvt.s32.f32 %v511
    %v528 = vcvt.s32.f32 %v512
    %v529 = vcvt.s32.f32 %v513
    %v530 = vcvt.s32.f32 %v514
    %v531 = vcvt.s32.f32 %v515
    %v532 = vcvt.s32.f32 %v516
    %v533 = vcvt.s32.f32 %v517
    %v534 = vcvt.s32.f32 %v518
    %v535 = vcvt.s32.f32 %v519
    %v536 = vcvt.s32.f32 %v520
    %v537 = vcvt.s32.f32 %v521
    %v538 = vcvt.s32.f32 %v522
    %v539 = vcvt.s32.f32 %v523
    %v540 = vcvt.s32.f32 %v524
    %v541 = vcvt.s32.f32 %v525
    %542 = vmatprep.subr.mxu0 0.0
    %543 = vmatpush1.msra.mxu0 %v53
    %544 = vmatprep.subr.mxu0 0.0
    %545 = vmatpush1.msra.mxu0 %v54
    %546 = vmatprep.subr.mxu0 0.0
    %547 = vmatpush1.msra.mxu0 %v55
    %548 = vmatprep.subr.mxu0 0.0
    %549 = vmatpush1.msra.mxu0 %v56
    %550 = vmatprep.subr.mxu0 0.0
    %551 = vmatpush1.msra.mxu0 %v57
    %552 = vmatprep.subr.mxu0 0.0
    %553 = vmatpush1.msra.mxu0 %v58
    %554 = vmatprep.subr.mxu0 0.0
    %555 = vmatpush1.msra.mxu0 %v59
    %556 = vmatprep.subr.mxu0 0.0
    %557 = vmatpush1.msra.mxu0 %v60
    %558 = vmatprep.subr.mxu0 0.0
    %559 = vmatpush1.msra.mxu0 %v61
    %560 = vmatprep.subr.mxu0 0.0
    %561 = vmatpush1.msra.mxu0 %v62
    %562 = vmatprep.subr.mxu0 0.0
    %563 = vmatpush1.msra.mxu0 %v63
    %564 = vmatprep.subr.mxu0 0.0
    %565 = vmatpush1.msra.mxu0 %v64
    %566 = vmatprep.subr.mxu0 0.0
    %567 = vmatpush1.msra.mxu0 %v65
    %568 = vmatprep.subr.mxu0 0.0
    %569 = vmatpush1.msra.mxu0 %v66
    %570 = vmatprep.subr.mxu0 0.0
    %571 = vmatpush1.msra.mxu0 %v67
    %572 = vmatprep.subr.mxu0 0.0
    %573 = vmatpush1.msra.mxu0 %v68
    %574 = vmatprep.subr.mxu0 0.0
    %575 = vmatpush1.msra.mxu0 0.0
    %576 = vmatprep.subr.mxu0 0.0
    %577 = vmatpush1.msra.mxu0 0.0
    %578 = vmatprep.subr.mxu0 0.0
    %579 = vmatpush1.msra.mxu0 0.0
    %580 = vmatprep.subr.mxu0 0.0
    %581 = vmatpush1.msra.mxu0 0.0
    %582 = vmatprep.subr.mxu0 0.0
    %583 = vmatpush1.msra.mxu0 0.0
    %584 = vmatprep.subr.mxu0 0.0
    %585 = vmatpush1.msra.mxu0 0.0
    %586 = vmatprep.subr.mxu0 0.0
    %587 = vmatpush1.msra.mxu0 0.0
    %588 = vmatprep.subr.mxu0 0.0
    %589 = vmatpush1.msra.mxu0 0.0
    %590 = vmatprep.subr.mxu0 0.0
    %591 = vmatpush1.msra.mxu0 0.0
    %592 = vmatprep.subr.mxu0 0.0
    %593 = vmatpush1.msra.mxu0 0.0
    %594 = vmatprep.subr.mxu0 0.0
    %595 = vmatpush1.msra.mxu0 0.0
    %596 = vmatprep.subr.mxu0 0.0
    %597 = vmatpush1.msra.mxu0 0.0
    %598 = vmatprep.subr.mxu0 0.0
    %599 = vmatpush1.msra.mxu0 0.0
    %600 = vmatprep.subr.mxu0 0.0
    %601 = vmatpush1.msra.mxu0 0.0
    %602 = vmatprep.subr.mxu0 0.0
    %603 = vmatpush1.msra.mxu0 0.0
    %604 = vmatprep.subr.mxu0 0.0
    %605 = vmatpush1.msra.mxu0 0.0
    %606 = vmatprep.mubr.f32.mxu0 0.0
    %607 = vmatmul.mubr.f32.gmra.mrb[0].mxu0 %v526
    %v608 = vpop.f32.mrb[0].mxu0
    %v609 = vadd.f32 0.0, %v608
    %v610 = vpop.f32.mrb[0].mxu0
    %611 = vmatprep.mubr.f32.mxu0 0.0
    %612 = vmatmul.mubr.f32.gmra.mrb[0].mxu0 %v527
    %v613 = vpop.f32.mrb[0].mxu0
    %v614 = vadd.f32 0.0, %v613
    %v615 = vpop.f32.mrb[0].mxu0
    %616 = vmatprep.mubr.f32.mxu0 0.0
    %617 = vmatmul.mubr.f32.gmra.mrb[0].mxu0 %v528
    %v618 = vpop.f32.mrb[0].mxu0
    %v619 = vadd.f32 0.0, %v618
    %v620 = vpop.f32.mrb[0].mxu0
    %621 = vmatprep.mubr.f32.mxu0 0.0
    %622 = vmatmul.mubr.f32.gmra.mrb[0].mxu0 %v529
    %v623 = vpop.f32.mrb[0].mxu0
    %v624 = vadd.f32 0.0, %v623
    %v625 = vpop.f32.mrb[0].mxu0
    %626 = vmatprep.mubr.f32.mxu0 0.0
    %627 = vmatmul.mubr.f32.gmra.mrb[0].mxu0 %v530
    %v628 = vpop.f32.mrb[0].mxu0
    %v629 = vadd.f32 0.0, %v628
    %v630 = vpop.f32.mrb[0].mxu0
    %631 = vmatprep.mubr.f32.mxu0 0.0
    %632 = vmatmul.mubr.f32.gmra.mrb[0].mxu0 %v531
    %v633 = vpop.f32.mrb[0].mxu0
    %v634 = vadd.f32 0.0, %v633
    %v635 = vpop.f32.mrb[0].mxu0
    %636 = vmatprep.mubr.f32.mxu0 0.0
    %637 = vmatmul.mubr.f32.gmra.mrb[0].mxu0 %v532
    %v638 = vpop.f32.mrb[0].mxu0
    %v639 = vadd.f32 0.0, %v638
    %v640 = vpop.f32.mrb[0].mxu0
    %641 = vmatprep.mubr.f32.mxu0 0.0
    %642 = vmatmul.mubr.f32.gmra.mrb[0].mxu0 %v533
    %v643 = vpop.f32.mrb[0].mxu0
    %v644 = vadd.f32 0.0, %v643
    %v645 = vpop.f32.mrb[0].mxu0
    %646 = vmatprep.mubr.f32.mxu0 0.0
    %647 = vmatmul.mubr.f32.gmra.mrb[0].mxu0 %v534
    %v648 = vpop.f32.mrb[0].mxu0
    %v649 = vadd.f32 0.0, %v648
    %v650 = vpop.f32.mrb[0].mxu0
    %651 = vmatprep.mubr.f32.mxu0 0.0
    %652 = vmatmul.mubr.f32.gmra.mrb[0].mxu0 %v535
    %v653 = vpop.f32.mrb[0].mxu0
    %v654 = vadd.f32 0.0, %v653
    %v655 = vpop.f32.mrb[0].mxu0
    %656 = vmatprep.mubr.f32.mxu0 0.0
    %657 = vmatmul.mubr.f32.gmra.mrb[0].mxu0 %v536
    %v658 = vpop.f32.mrb[0].mxu0
    %v659 = vadd.f32 0.0, %v658
    %v660 = vpop.f32.mrb[0].mxu0
    %661 = vmatprep.mubr.f32.mxu0 0.0
    %662 = vmatmul.mubr.f32.gmra.mrb[0].mxu0 %v537
    %v663 = vpop.f32.mrb[0].mxu0
    %v664 = vadd.f32 0.0, %v663
    %v665 = vpop.f32.mrb[0].mxu0
    %666 = vmatprep.mubr.f32.mxu0 0.0
    %667 = vmatmul.mubr.f32.gmra.mrb[0].mxu0 %v538
    %v668 = vpop.f32.mrb[0].mxu0
    %v669 = vadd.f32 0.0, %v668
    %v670 = vpop.f32.mrb[0].mxu0
    %671 = vmatprep.mubr.f32.mxu0 0.0
    %672 = vmatmul.mubr.f32.gmra.mrb[0].mxu0 %v539
    %v673 = vpop.f32.mrb[0].mxu0
    %v674 = vadd.f32 0.0, %v673
    %v675 = vpop.f32.mrb[0].mxu0
    %676 = vmatprep.mubr.f32.mxu0 0.0
    %677 = vmatmul.mubr.f32.gmra.mrb[0].mxu0 %v540
    %v678 = vpop.f32.mrb[0].mxu0
    %v679 = vadd.f32 0.0, %v678
    %v680 = vpop.f32.mrb[0].mxu0
    %681 = vmatprep.mubr.f32.mxu0 0.0
    %682 = vmatmul.mubr.f32.gmra.mrb[0].mxu0 %v541
    %v683 = vpop.f32.mrb[0].mxu0
    %v684 = vadd.f32 0.0, %v683
    %v685 = vpop.f32.mrb[0].mxu0
    %686 = vdwg.mxu0
    %v687 = vsub.f32 %v609, %v37
    %v688 = vsub.f32 %v614, %v38
    %v689 = vsub.f32 %v619, %v39
    %v690 = vsub.f32 %v624, %v40
    %v691 = vsub.f32 %v629, %v41
    %v692 = vsub.f32 %v634, %v42
    %v693 = vsub.f32 %v639, %v43
    %v694 = vsub.f32 %v644, %v44
    %v695 = vsub.f32 %v649, %v45
    %v696 = vsub.f32 %v654, %v46
    %v697 = vsub.f32 %v659, %v47
    %v698 = vsub.f32 %v664, %v48
    %v699 = vsub.f32 %v669, %v49
    %v700 = vsub.f32 %v674, %v50
    %v701 = vsub.f32 %v679, %v51
    %v702 = vsub.f32 %v684, %v52
    %v703 = vlaneseq
    %v704 = vshrl.u32 %v703, 7
    %v705 = vadd.s32 %v704, 8
    %v706 = vadd.s32 %v704, 16
    %v707 = vadd.s32 %v704, 24
    %v708 = vadd.s32 %v704, 32
    %v709 = vadd.s32 %v704, 40
    %v710 = vadd.s32 %v704, 48
    %v711 = vadd.s32 %v704, 56
    %v712 = vadd.s32 %v704, 64
    %v713 = vadd.s32 %v704, 72
    %v714 = vadd.s32 %v704, 80
    %v715 = vadd.s32 %v704, 88
    %v716 = vadd.s32 %v704, 96
    %v717 = vadd.s32 %v704, 104
    %v718 = vadd.s32 %v704, 112
    %v719 = vadd.s32 %v704, 120
    %s720 = smul.u32 0, 128
    %v721 = vstv %s720
    %v722 = vadd.s32 %v704, %v721
    %v723 = vadd.s32 %v705, %v721
    %v724 = vadd.s32 %v706, %v721
    %v725 = vadd.s32 %v707, %v721
    %v726 = vadd.s32 %v708, %v721
    %v727 = vadd.s32 %v709, %v721
    %v728 = vadd.s32 %v710, %v721
    %v729 = vadd.s32 %v711, %v721
    %v730 = vadd.s32 %v712, %v721
    %v731 = vadd.s32 %v713, %v721
    %v732 = vadd.s32 %v714, %v721
    %v733 = vadd.s32 %v715, %v721
    %v734 = vadd.s32 %v716, %v721
    %v735 = vadd.s32 %v717, %v721
    %v736 = vadd.s32 %v718, %v721
    %v737 = vadd.s32 %v719, %v721
    %vm738 = vcmp.lt.s32.totalorder %v722, 128
    %vm739 = vcmp.lt.s32.totalorder %v723, 128
    %vm740 = vcmp.lt.s32.totalorder %v724, 128
    %vm741 = vcmp.lt.s32.totalorder %v725, 128
    %vm742 = vcmp.lt.s32.totalorder %v726, 128
    %vm743 = vcmp.lt.s32.totalorder %v727, 128
    %vm744 = vcmp.lt.s32.totalorder %v728, 128
    %vm745 = vcmp.lt.s32.totalorder %v729, 128
    %vm746 = vcmp.lt.s32.totalorder %v730, 128
    %vm747 = vcmp.lt.s32.totalorder %v731, 128
    %vm748 = vcmp.lt.s32.totalorder %v732, 128
    %vm749 = vcmp.lt.s32.totalorder %v733, 128
    %vm750 = vcmp.lt.s32.totalorder %v734, 128
    %vm751 = vcmp.lt.s32.totalorder %v735, 128
    %vm752 = vcmp.lt.s32.totalorder %v736, 128
    %vm753 = vcmp.lt.s32.totalorder %v737, 128
    %v754 = vsel %vm738, 1, 0
    %v755 = vsel %vm739, 1, 0
    %v756 = vsel %vm740, 1, 0
    %v757 = vsel %vm741, 1, 0
    %v758 = vsel %vm742, 1, 0
    %v759 = vsel %vm743, 1, 0
    %v760 = vsel %vm744, 1, 0
    %v761 = vsel %vm745, 1, 0
    %v762 = vsel %vm746, 1, 0
    %v763 = vsel %vm747, 1, 0
    %v764 = vsel %vm748, 1, 0
    %v765 = vsel %vm749, 1, 0
    %v766 = vsel %vm750, 1, 0
    %v767 = vsel %vm751, 1, 0
    %v768 = vsel %vm752, 1, 0
    %v769 = vsel %vm753, 1, 0
    %v770 = vcvt.s32.f32 %v754
    %v771 = vcvt.s32.f32 %v755
    %v772 = vcvt.s32.f32 %v756
    %v773 = vcvt.s32.f32 %v757
    %v774 = vcvt.s32.f32 %v758
    %v775 = vcvt.s32.f32 %v759
    %v776 = vcvt.s32.f32 %v760
    %v777 = vcvt.s32.f32 %v761
    %v778 = vcvt.s32.f32 %v762
    %v779 = vcvt.s32.f32 %v763
    %v780 = vcvt.s32.f32 %v764
    %v781 = vcvt.s32.f32 %v765
    %v782 = vcvt.s32.f32 %v766
    %v783 = vcvt.s32.f32 %v767
    %v784 = vcvt.s32.f32 %v768
    %v785 = vcvt.s32.f32 %v769
    %v786 = vmul.f32 %v687, %v687
    %v787 = vmul.f32 %v688, %v688
    %v788 = vmul.f32 %v689, %v689
    %v789 = vmul.f32 %v690, %v690
    %v790 = vmul.f32 %v691, %v691
    %v791 = vmul.f32 %v692, %v692
    %v792 = vmul.f32 %v693, %v693
    %v793 = vmul.f32 %v694, %v694
    %v794 = vmul.f32 %v695, %v695
    %v795 = vmul.f32 %v696, %v696
    %v796 = vmul.f32 %v697, %v697
    %v797 = vmul.f32 %v698, %v698
    %v798 = vmul.f32 %v699, %v699
    %v799 = vmul.f32 %v700, %v700
    %v800 = vmul.f32 %v701, %v701
    %v801 = vmul.f32 %v702, %v702
    %v802 = vmul.f32 %v786, %v770
    %v803 = vmul.f32 %v787, %v771
    %v804 = vmul.f32 %v788, %v772
    %v805 = vmul.f32 %v789, %v773
    %v806 = vmul.f32 %v790, %v774
    %v807 = vmul.f32 %v791, %v775
    %v808 = vmul.f32 %v792, %v776
    %v809 = vmul.f32 %v793, %v777
    %v810 = vmul.f32 %v794, %v778
    %v811 = vmul.f32 %v795, %v779
    %v812 = vmul.f32 %v796, %v780
    %v813 = vmul.f32 %v797, %v781
    %v814 = vmul.f32 %v798, %v782
    %v815 = vmul.f32 %v799, %v783
    %v816 = vmul.f32 %v800, %v784
    %v817 = vmul.f32 %v801, %v785
    %v818 = vsel %vm69, %v802, 0.0
    %v819 = vsel %vm69, %v803, 0.0
    %v820 = vadd.f32 %v818, %v819
    %v821 = vsel %vm69, %v804, 0.0
    %v822 = vadd.f32 %v820, %v821
    %v823 = vsel %vm69, %v805, 0.0
    %v824 = vadd.f32 %v822, %v823
    %v825 = vsel %vm69, %v806, 0.0
    %v826 = vadd.f32 %v824, %v825
    %v827 = vsel %vm69, %v807, 0.0
    %v828 = vadd.f32 %v826, %v827
    %v829 = vsel %vm69, %v808, 0.0
    %v830 = vadd.f32 %v828, %v829
    %v831 = vsel %vm69, %v809, 0.0
    %v832 = vadd.f32 %v830, %v831
    %v833 = vsel %vm69, %v810, 0.0
    %v834 = vadd.f32 %v832, %v833
    %v835 = vsel %vm69, %v811, 0.0
    %v836 = vadd.f32 %v834, %v835
    %v837 = vsel %vm69, %v812, 0.0
    %v838 = vadd.f32 %v836, %v837
    %v839 = vsel %vm69, %v813, 0.0
    %v840 = vadd.f32 %v838, %v839
    %v841 = vsel %vm69, %v814, 0.0
    %v842 = vadd.f32 %v840, %v841
    %v843 = vsel %vm69, %v815, 0.0
    %v844 = vadd.f32 %v842, %v843
    %v845 = vsel %vm69, %v816, 0.0
    %v846 = vadd.f32 %v844, %v845
    %v847 = vsel %vm69, %v817, 0.0
    %v848 = vadd.f32 %v846, %v847
    %849 = vadd.xlane.f32.xlu0 %v848
    %v850 = vpop.xlane.xlu0 %849
    %v851 = vrot.slane %v850, 4
    %v852 = vadd.f32 %v850, %v851
    %v853 = vrot.slane %v852, 2
    %v854 = vadd.f32 %v852, %v853
    %v855 = vrot.slane %v854, 1
    %v856 = vadd.f32 %v854, %v855
    %s857 = vtos %v856
    %v858 = vstv %s857
    %859 = vst [vmem:[%s6] sm:$0x1] %v858
    %v860 = vadd.f32 %v37, %v687
    %v861 = vadd.f32 %v38, %v688
    %v862 = vadd.f32 %v39, %v689
    %v863 = vadd.f32 %v40, %v690
    %v864 = vadd.f32 %v41, %v691
    %v865 = vadd.f32 %v42, %v692
    %v866 = vadd.f32 %v43, %v693
    %v867 = vadd.f32 %v44, %v694
    %v868 = vadd.f32 %v45, %v695
    %v869 = vadd.f32 %v46, %v696
    %v870 = vadd.f32 %v47, %v697
    %v871 = vadd.f32 %v48, %v698
    %v872 = vadd.f32 %v49, %v699
    %v873 = vadd.f32 %v50, %v700
    %v874 = vadd.f32 %v51, %v701
    %v875 = vadd.f32 %v52, %v702
    %876 = vst.msk [vmem:[#allocation2] sm:$0xff] %vm69, %v860
    %877 = vst.msk [vmem:[#allocation2 + $0x8] sm:$0xff] %vm69, %v861
    %878 = vst.msk [vmem:[#allocation2 + $0x10] sm:$0xff] %vm69, %v862
    %879 = vst.msk [vmem:[#allocation2 + $0x18] sm:$0xff] %vm69, %v863
    %880 = vst.msk [vmem:[#allocation2 + $0x20] sm:$0xff] %vm69, %v864
    %881 = vst.msk [vmem:[#allocation2 + $0x28] sm:$0xff] %vm69, %v865
    %882 = vst.msk [vmem:[#allocation2 + $0x30] sm:$0xff] %vm69, %v866
    %883 = vst.msk [vmem:[#allocation2 + $0x38] sm:$0xff] %vm69, %v867
    %884 = vst.msk [vmem:[#allocation2 + $0x40] sm:$0xff] %vm69, %v868
    %885 = vst.msk [vmem:[#allocation2 + $0x48] sm:$0xff] %vm69, %v869
    %886 = vst.msk [vmem:[#allocation2 + $0x50] sm:$0xff] %vm69, %v870
    %887 = vst.msk [vmem:[#allocation2 + $0x58] sm:$0xff] %vm69, %v871
    %888 = vst.msk [vmem:[#allocation2 + $0x60] sm:$0xff] %vm69, %v872
    %889 = vst.msk [vmem:[#allocation2 + $0x68] sm:$0xff] %vm69, %v873
    %890 = vst.msk [vmem:[#allocation2 + $0x70] sm:$0xff] %vm69, %v874
    %891 = vst.msk [vmem:[#allocation2 + $0x78] sm:$0xff] %vm69, %v875
    // Predicated region
    $region18: #{codebook_forward.1} parent=1 // pred_check
      _
    $region19: #{codebook_forward.1} parent=1 // pred_check_branch
      %893 = sbr.rel (0) target = $region21
    $region20: #{codebook_forward.1} parent=1 // pred_region
      _
    $region21: #{codebook_forward.1} parent=1 // pred_fallthru
      _
    // Predicated region
    $region22: #{codebook_forward.1} parent=1 // pred_check
      _
    $region23: #{codebook_forward.1} parent=1 // pred_check_branch
      %895 = sbr.rel (0) target = $region25
    $region24: #{codebook_forward.1} parent=1 // pred_region
      %s897 = ssub.s32 2048, 2048
      %898 = vsyncadd [#allocation3], %s897
      %s899 = sshll.u32 [#allocation2], 4
      %s900 = int_to_ptr.vmem [resolvable:$true] %s899
      %905 = dma.vmem_to_hbm [thread:$0]  %s900, 2048, %s5, [#allocation3], 128, 128, 8
    $region25: #{codebook_forward.1} parent=1 // pred_fallthru
      _
    // Predicated region
    $region26: #{codebook_forward.1} parent=1 // pred_check
      _
    $region27: #{codebook_forward.1} parent=1 // pred_check_branch
      %907 = sbr.rel (0) target = $region29
    $region28: #{codebook_forward.1} parent=1 // pred_region
      _
    $region29: #{codebook_forward.1} parent=1 // pred_fallthru
      _
    // Predicated region
    $region30: #{codebook_forward.1} parent=1 // pred_check
      _
    $region31: #{codebook_forward.1} parent=1 // pred_check_branch
      %909 = sbr.rel (0) target = $region33
    $region32: #{codebook_forward.1} parent=1 // pred_region
      _
    $region33: #{codebook_forward.1} parent=1 // pred_fallthru
      _
    // Predicated region
    $region34: #{codebook_forward.1} parent=1 // pred_check
      _
    $region35: #{codebook_forward.1} parent=1 // pred_check_branch
      %911 = sbr.rel (0) target = $region37
    $region36: #{codebook_forward.1} parent=1 // pred_region
      %912 = dma.done [#allocation3], 2048
    $region37: #{codebook_forward.1} parent=1 // pred_fallthru
      _
    // Predicated region
    $region38: #{codebook_forward.1} parent=1 // pred_check
      _
    $region39: #{codebook_forward.1} parent=1 // pred_check_branch
      %914 = sbr.rel (0) target = $region41
    $region40: #{codebook_forward.1} parent=1 // pred_region
      _
    $region41: #{codebook_forward.1} parent=1 // pred_fallthru
      _
    %915 = vsyncpa [#allocation3], 1

</llo_original>
